<compile_context>
chip_gen: v5e
topology: v5e:2x2
jax: 0.10.0
libtpu: 0.0.40
codegen_flags: <defaults>
</compile_context>

<pallas_src>
import math

import jax
import jax.numpy as jnp
from jax.experimental import pallas as pl
from jax.experimental.pallas import tpu as pltpu

_LOG2 = math.log(2.0)
_LANE = 128
_SUBLANE = 8
# ~2 MiB per f32 block -> in+out double-buffered ~= 8 MiB VMEM.
_TARGET_BLOCK_ELEMS = 512 * 1024


def _smoothed_relu_kernel(x_ref, o_ref):
    # Compute in f32 (accuracy + v5e has no bf16 VPU/EUP).
    x = x_ref[...].astype(jnp.float32)
    r = jnp.maximum(x, 0.0)                      # ReLU
    # log_cosh(r) = r + softplus(-2r) - log(2); r >= 0 so exp(-2r) in (0,1] (stable).
    sp = jnp.log1p(jnp.exp(-2.0 * r))
    o_ref[...] = (r + sp - _LOG2).astype(o_ref.dtype)


def _choose_width(n: int) -> int:
    # Widest lane-dense width (multiple of 128) dividing n, capped at 1024.
    for w in (1024, 512, 256, 128):
        if n % w == 0:
            return w
    return _LANE  # not lane-aligned -> caller pads to 128


def smoothed_relu(x: jax.Array) -> jax.Array:
    """Elementwise log_cosh(relu(x)) via a Pallas TPU kernel. Any shape/dtype."""
    orig_shape = x.shape
    dtype = x.dtype

    flat = x.reshape(-1)
    n = flat.shape[0]
    if n == 0:
        return x

    width = _choose_width(n)
    needs_pad = (n % width) != 0
    if needs_pad:
        # Rare non-lane-aligned case: pad the flat array up to a lane multiple.
        flat = jnp.pad(flat, (0, width - (n % width)))

    rows = flat.shape[0] // width
    x2d = flat.reshape(rows, width)              # lane-dense (rows, W) slab

    # Large, sublane-aligned row block; a single block if everything fits.
    if rows * width <= _TARGET_BLOCK_ELEMS:
        block_rows = rows                         # block == full dim (always legal)
    else:
        block_rows = max(
            _SUBLANE,
            (_TARGET_BLOCK_ELEMS // width) // _SUBLANE * _SUBLANE,
        )
    grid = (pl.cdiv(rows, block_rows),)          # partial last block is masked

    out2d = pl.pallas_call(
        _smoothed_relu_kernel,
        out_shape=jax.ShapeDtypeStruct((rows, width), dtype),
        grid=grid,
        in_specs=[pl.BlockSpec((block_rows, width), lambda i: (i, 0))],
        out_specs=pl.BlockSpec((block_rows, width), lambda i: (i, 0)),
        compiler_params=pltpu.CompilerParams(
            dimension_semantics=("parallel",),
        ),
    )(x2d)

    out = out2d.reshape(-1)
    if needs_pad:
        out = out[:n]
    return out.reshape(orig_shape)


def _reference(x):
    xf = x.astype(jnp.float32)
    r = jnp.maximum(xf, 0.0)
    return (r + jnp.log1p(jnp.exp(-2.0 * r)) - _LOG2).astype(x.dtype)


if __name__ == "__main__":
    key = jax.random.PRNGKey(0)
    # NCHW, small shape consistent with a conv-block activation.
    x = jax.random.normal(key, (2, 4, 16, 16), dtype=jnp.float32)

    y = smoothed_relu(x)
    y = jax.block_until_ready(y)

    y_ref = _reference(x)
    assert y.shape == x.shape and y.dtype == x.dtype
    assert jnp.allclose(y, y_ref, atol=1e-6, rtol=1e-6)

    print("KERNEL_OK")
</pallas_src>

<mosaic_0001>
module attributes {stable_mosaic.version = 11 : i64} {
  func.func @_smoothed_relu_kernel(%arg0: i32, %arg1: memref<2x1024xf32, #tpu.memory_space<vmem>>, %arg2: memref<2x1024xf32, #tpu.memory_space<vmem>>) attributes {dimension_semantics = [#tpu.dimension_semantics<parallel>], iteration_bounds = array<i64: 1>, scalar_prefetch = 0 : i64, scratch_operands = 0 : i64, tpu.core_type = #tpu.core_type<tc>, window_params = [{transform_indices = @transform_0, window_bounds = array<i64: 2, 1024>}, {transform_indices = @transform_1, window_bounds = array<i64: 2, 1024>}]} {
    %c0 = arith.constant 0 : index
    %c0_0 = arith.constant 0 : index
    %0 = vector.load %arg1[%c0, %c0_0] : memref<2x1024xf32, #tpu.memory_space<vmem>>, vector<2x1024xf32>
    %cst = arith.constant 0.000000e+00 : f32
    %1 = vector.broadcast %cst : f32 to vector<2x1024xf32>
    %2 = arith.maximumf %0, %1 : vector<2x1024xf32>
    %cst_1 = arith.constant -2.000000e+00 : f32
    %3 = vector.broadcast %cst_1 : f32 to vector<2x1024xf32>
    %4 = arith.mulf %3, %2 : vector<2x1024xf32>
    %5 = math.exp %4 : vector<2x1024xf32>
    %6 = math.log1p %5 : vector<2x1024xf32>
    %7 = arith.addf %2, %6 : vector<2x1024xf32>
    %cst_2 = arith.constant 0.693147182 : f32
    %8 = vector.broadcast %cst_2 : f32 to vector<2x1024xf32>
    %9 = arith.subf %7, %8 : vector<2x1024xf32>
    %c0_3 = arith.constant 0 : index
    %c0_4 = arith.constant 0 : index
    %10 = vector.load %arg2[%c0_3, %c0_4] : memref<2x1024xf32, #tpu.memory_space<vmem>>, vector<2x1024xf32>
    tpu.vector_store %arg2[%c0_3, %c0_4], %9 {strides = array<i32>} : memref<2x1024xf32, #tpu.memory_space<vmem>>, vector<2x1024xf32>,
    return
  }
  func.func @transform_0(%arg0: i32) -> (i32, i32) {
    %c0_i32 = arith.constant 0 : i32
    %c0_i32_0 = arith.constant 0 : i32
    return %arg0, %c0_i32 : i32, i32
  }
  func.func @transform_1(%arg0: i32) -> (i32, i32) {
    %c0_i32 = arith.constant 0 : i32
    %c0_i32_0 = arith.constant 0 : i32
    return %arg0, %c0_i32 : i32, i32
  }
}

</mosaic_0001>

<llo_original>
// kernel: tpu_custom_call.1
$region0: #{tpu_custom_call.1}
  #allocation0 [shape = 'u32[]', space=smem, size = 0x4, offset = 0x4, fixed_abs, tag = 'smem constant byte address 0x4 - core index']
  #allocation1 [shape = 'u32[72,128]{1,0:T(1,128)}', space=vmem, size = 0x9000, scoped, tag = 'internal scratch']
  %s0 = inlined_call_operand.hbm [shape: f32[2,1024], index: 0, kind: input, shape index: {}]
  %s1 = inlined_call_operand.hbm [shape: f32[2,1024], index: 1, kind: output, shape index: {}]
  %s2 = sld [smem:[#allocation0]]
  $region18: #{tpu_custom_call.1} parent=0
    _
  %s4 = ssub.s32 1, %s2
  %s5 = scalar_select 0, %s4, %s2
  $region1: #{tpu_custom_call.1} parent=0
    #allocation2 [shape = 'u8[8192]{0}', space=vmem, size = 0x2000, scoped, tag = 'input window, operand 0, single buffered']
    #allocation3 [shape = 's32[1]{0}', space=sflag, size = 0x4, scoped, tag = 'scoped memory for tpu_custom_call.1']
    #allocation4 [shape = 's32[1]{0}', space=sflag, size = 0x4, scoped, tag = 'scoped memory for tpu_custom_call.1']
    #allocation5 [shape = 'u8[8192]{0}', space=vmem, size = 0x2000, scoped, tag = 'output window, operand 0, single buffered']
    %6 = vsyncpa [#allocation3], 0
    %7 = vsyncpa [#allocation4], 0
    // Predicated region
    $region2: #{tpu_custom_call.1} parent=1 // pred_check
      _
    $region3: #{tpu_custom_call.1} parent=1 // pred_check_branch
      %9 = sbr.rel (0) target = $region5
    $region4: #{tpu_custom_call.1} parent=1 // pred_region
      %11 = vsyncadd [#allocation3], 0
      %s13 = sshll.u32 %s0, 4
      %s14 = int_to_ptr.hbm [resolvable:$true] %s13
      %s15 = sshll.u32 [#allocation2], 4
      %s16 = int_to_ptr.vmem [resolvable:$true] %s15
      %18 = dma.hbm_to_vmem [thread:$0]  %s14, 256, %s16, [#allocation3]
    $region5: #{tpu_custom_call.1} parent=1 // pred_fallthru
      _
    // Predicated region
    $region6: #{tpu_custom_call.1} parent=1 // pred_check
      _
    $region7: #{tpu_custom_call.1} parent=1 // pred_check_branch
      %20 = sbr.rel (0) target = $region9
    $region8: #{tpu_custom_call.1} parent=1 // pred_region
      %22 = dma.done [#allocation3], 256
    $region9: #{tpu_custom_call.1} parent=1 // pred_fallthru
      _
    %v23 = vld [vmem:[#allocation2] sm:$0xff]
    %v24 = vld [vmem:[#allocation2 + $0x8] sm:$0xff]
    %v25 = vmax.f32 %v23, 0.0
    %v26 = vmax.f32 %v24, 0.0
    %v27 = vmul.f32 %v25, -2.0
    %v28 = vmul.f32 %v26, -2.0
    %v29 = vmul.f32 %v27, 1.442695
    %v30 = vpow.pop %v29
    %v31 = vmul.f32 %v28, 1.442695
    %v32 = vpow.pop %v31
    %v33 = vadd.f32 %v30, 1.0
    %v34 = vlog2.pop %v33
    %v35 = vmul.f32 %v34, 0.6931472
    %v36 = vmul.f32 -0.5, %v30
    %v37 = vadd.f32 %v36, 1.0
    %v38 = vmul.f32 %v37, %v30
    %v39 = vand.u32 2147483647, %v30
    %vm40 = vcmp.lt.f32.partialorder %v39, 0.0004427343
    %v41 = vsel %vm40, %v38, %v35
    %v42 = vadd.f32 %v32, 1.0
    %v43 = vlog2.pop %v42
    %v44 = vmul.f32 %v43, 0.6931472
    %v45 = vmul.f32 -0.5, %v32
    %v46 = vadd.f32 %v45, 1.0
    %v47 = vmul.f32 %v46, %v32
    %v48 = vand.u32 2147483647, %v32
    %vm49 = vcmp.lt.f32.partialorder %v48, 0.0004427343
    %v50 = vsel %vm49, %v47, %v44
    %v51 = vadd.f32 %v25, %v41
    %v52 = vadd.f32 %v26, %v50
    %v53 = vsub.f32 %v51, 0.6931472
    %v54 = vsub.f32 %v52, 0.6931472
    %55 = vst [vmem:[#allocation5] sm:$0xff] %v53
    %56 = vst [vmem:[#allocation5 + $0x8] sm:$0xff] %v54
    // Predicated region
    $region10: #{tpu_custom_call.1} parent=1 // pred_check
      _
    $region11: #{tpu_custom_call.1} parent=1 // pred_check_branch
      %58 = sbr.rel (0) target = $region13
    $region12: #{tpu_custom_call.1} parent=1 // pred_region
      %60 = vsyncadd [#allocation4], 0
      %s62 = sshll.u32 [#allocation5], 4
      %s63 = int_to_ptr.vmem [resolvable:$true] %s62
      %s64 = sshll.u32 %s1, 4
      %s65 = int_to_ptr.hbm [resolvable:$true] %s64
      %67 = dma.vmem_to_hbm [thread:$0]  %s63, 256, %s65, [#allocation4]
    $region13: #{tpu_custom_call.1} parent=1 // pred_fallthru
      _
    // Predicated region
    $region14: #{tpu_custom_call.1} parent=1 // pred_check
      _
    $region15: #{tpu_custom_call.1} parent=1 // pred_check_branch
      %69 = sbr.rel (0) target = $region17
    $region16: #{tpu_custom_call.1} parent=1 // pred_region
      %71 = dma.done [#allocation4], 256
    $region17: #{tpu_custom_call.1} parent=1 // pred_fallthru
      _
    %72 = vsyncpa [#allocation3], 1
    %73 = vsyncpa [#allocation4], 1

</llo_original>
